<compile_context>
chip_gen: v5e
topology: v5e:2x2
jax: 0.10.0
libtpu: 0.0.40
codegen_flags: <defaults>
</compile_context>

<pallas_src>
import jax
import jax.numpy as jnp
from jax.experimental import pallas as pl
from jax.experimental.pallas import tpu as pltpu

NPACK = 128          # lane-dense packed-logits width (one vreg lane row)
MAX_ROW_TILE = 512   # largest row tile (multiple of 8); fits VMEM with huge margin


# ---------------------------------------------------------------------------
# Exact (erf) GELU built from guaranteed-lowerable ops.
# ---------------------------------------------------------------------------
def _erf(x):
    # Abramowitz & Stegun 7.1.26 rational approximation, |err| <= 1.5e-7 (f32).
    p = 0.3275911
    a1, a2, a3, a4, a5 = (0.254829592, -0.284496736, 1.421413741,
                          -1.453152027, 1.061405429)
    sgn = jnp.where(x >= 0.0, 1.0, -1.0)
    ax = jnp.abs(x)
    t = 1.0 / (1.0 + p * ax)
    poly = ((((a5 * t + a4) * t + a3) * t + a2) * t + a1) * t
    y = 1.0 - poly * jnp.exp(-ax * ax)
    return sgn * y


def _gelu_exact(x):
    # Matches PyTorch nn.GELU default (exact erf GELU).
    return 0.5 * x * (1.0 + _erf(x * 0.7071067811865476))


# ---------------------------------------------------------------------------
# Kernel A: encoder + head0 + head2 (rank-1 custom-feature update), fused.
# ---------------------------------------------------------------------------
def _fused_token_kernel(emb_ref, cust_ref, w_enc_ref, b_enc_ref,
                        w_tok_ref, b_tok_ref, w2x_ref,
                        seq_ref, logits_ref):
    # Encoder: seq = gelu(emb @ W_enc + b_enc)   (bf16 MXU inputs, f32 accum)
    h = jnp.dot(emb_ref[...], w_enc_ref[...], preferred_element_type=jnp.float32)
    h = h + b_enc_ref[...]
    seq = _gelu_exact(h)
    seq_ref[...] = seq.astype(seq_ref.dtype)

    # Packed token-level heads in one lane-dense [tm, 128] MXU pass:
    #   cols [0,5)  = head0 (per_token)
    #   cols [5,9)  = head2 base (first H rows of W_h2)
    logits = jnp.dot(seq.astype(w_tok_ref.dtype), w_tok_ref[...],
                     preferred_element_type=jnp.float32)
    # Rank-1 update = contribution of the concatenated custom feature (row H of
    # W_h2); replaces materializing the [B,S,H+1] concat.
    logits = logits + b_tok_ref[...] + cust_ref[...] * w2x_ref[...]
    logits_ref[...] = logits.astype(logits_ref.dtype)


# ---------------------------------------------------------------------------
# Kernel B: pooler (tanh) + head1 (per_sequence), fused, single block.
# ---------------------------------------------------------------------------
def _fused_pooler_kernel(tok0_ref, w_pool_ref, b_pool_ref,
                         w_h1_ref, b_h1_ref, o_ref):
    pooled = jnp.tanh(
        jnp.dot(tok0_ref[...], w_pool_ref[...],
                preferred_element_type=jnp.float32) + b_pool_ref[...])
    logits = jnp.dot(pooled.astype(w_h1_ref.dtype), w_h1_ref[...],
                     preferred_element_type=jnp.float32) + b_h1_ref[...]
    o_ref[...] = logits.astype(o_ref.dtype)


# ---------------------------------------------------------------------------
# Wrappers
# ---------------------------------------------------------------------------
def _row_tiling(m, max_tile=MAX_ROW_TILE):
    """Return (padded_rows, row_tile): tile is a multiple of 8, bounded by
    max_tile, and divides padded_rows (bounded VMEM for any M)."""
    m_pad = -(-m // 8) * 8
    if m_pad <= max_tile:
        return m_pad, m_pad
    m_pad = -(-m // max_tile) * max_tile
    return m_pad, max_tile


def _pad_rows(x, m_pad):
    m = x.shape[0]
    if m_pad == m:
        return x
    return jnp.pad(x, [(0, m_pad - m)] + [(0, 0)] * (x.ndim - 1))


def fused_token_forward(emb, custom, w_enc, b_enc, w_tok, b_tok, w2x):
    """emb:[M,H] bf16, custom:[M,1] f32 -> (seq [M,H] f32, packed logits [M,128] f32)."""
    M, H = emb.shape
    m_pad, tm = _row_tiling(M)
    n_tiles = pl.cdiv(m_pad, tm)

    emb_p = _pad_rows(emb, m_pad)
    cust_p = _pad_rows(custom, m_pad)

    seq, logits = pl.pallas_call(
        _fused_token_kernel,
        out_shape=(jax.ShapeDtypeStruct((m_pad, H), jnp.float32),
                   jax.ShapeDtypeStruct((m_pad, NPACK), jnp.float32)),
        grid_spec=pltpu.PrefetchScalarGridSpec(
            num_scalar_prefetch=0,
            grid=(n_tiles,),
            in_specs=[
                pl.BlockSpec((tm, H), lambda i: (i, 0)),       # emb row-tile
                pl.BlockSpec((tm, 1), lambda i: (i, 0)),       # custom feature
                pl.BlockSpec((H, H), lambda i: (0, 0)),        # W_enc (VMEM resident)
                pl.BlockSpec((1, H), lambda i: (0, 0)),        # b_enc
                pl.BlockSpec((H, NPACK), lambda i: (0, 0)),    # packed head weights
                pl.BlockSpec((1, NPACK), lambda i: (0, 0)),    # packed head bias
                pl.BlockSpec((1, NPACK), lambda i: (0, 0)),    # rank-1 row (W_h2[H])
            ],
            out_specs=(
                pl.BlockSpec((tm, H), lambda i: (i, 0)),       # sequence_output
                pl.BlockSpec((tm, NPACK), lambda i: (i, 0)),   # packed logits slab
            ),
        ),
        compiler_params=pltpu.CompilerParams(
            dimension_semantics=("parallel",)),                # v7x: 2-TC sharding
    )(emb_p, cust_p, w_enc, b_enc, w_tok, b_tok, w2x)
    return seq[:M], logits[:M]


def fused_pooler_forward(tok0, w_pool, b_pool, w_h1p, b_h1p):
    """tok0:[B,H] bf16 -> head1 packed logits [B,128] f32 (single-block kernel)."""
    B = tok0.shape[0]
    return pl.pallas_call(
        _fused_pooler_kernel,
        out_shape=jax.ShapeDtypeStruct((B, NPACK), jnp.float32),
    )(tok0, w_pool, b_pool, w_h1p, b_h1p)


# ---------------------------------------------------------------------------
# Parameter init (deterministic, synthetic — no checkpoint loading)
# ---------------------------------------------------------------------------
def init_params(key, vocab=50, hidden=32, n_labels0=5, n_labels1=3, n_labels2=4):
    ks = jax.random.split(key, 6)
    s = 0.02
    return {
        "word_emb": s * jax.random.normal(ks[0], (vocab, hidden), jnp.float32),
        "w_enc":    s * jax.random.normal(ks[1], (hidden, hidden), jnp.float32),
        "b_enc":    jnp.zeros((hidden,), jnp.float32),
        "w_pool":   s * jax.random.normal(ks[2], (hidden, hidden), jnp.float32),
        "b_pool":   jnp.zeros((hidden,), jnp.float32),
        "w_h0":     s * jax.random.normal(ks[3], (hidden, n_labels0), jnp.float32),
        "b_h0":     jnp.zeros((n_labels0,), jnp.float32),
        "w_h1":     s * jax.random.normal(ks[4], (hidden, n_labels1), jnp.float32),
        "b_h1":     jnp.zeros((n_labels1,), jnp.float32),
        "w_h2":     s * jax.random.normal(ks[5], (hidden + 1, n_labels2), jnp.float32),
        "b_h2":     jnp.zeros((n_labels2,), jnp.float32),
    }


# ---------------------------------------------------------------------------
# AdaptiveModel.forward equivalent
# ---------------------------------------------------------------------------
def adaptive_model_forward(params, input_ids, custom_data):
    B, S = input_ids.shape
    H = params["word_emb"].shape[1]
    n0 = params["w_h0"].shape[1]
    n1 = params["w_h1"].shape[1]
    n2 = params["w_h2"].shape[1]
    cdt = jnp.bfloat16  # MXU input dtype (f32 accumulation inside the kernels)

    # --- language model: embedding gather (glue; data-dependent gather stays in JAX)
    emb = params["word_emb"][input_ids].reshape(B * S, H)

    # --- pack token-level heads into one lane-dense [H, 128] weight slab
    w_tok = jnp.zeros((H, NPACK), jnp.float32)
    w_tok = w_tok.at[:, :n0].set(params["w_h0"])
    w_tok = w_tok.at[:, n0:n0 + n2].set(params["w_h2"][:H])
    b_tok = jnp.zeros((1, NPACK), jnp.float32)
    b_tok = b_tok.at[0, :n0].set(params["b_h0"])
    b_tok = b_tok.at[0, n0:n0 + n2].set(params["b_h2"])
    w2x = jnp.zeros((1, NPACK), jnp.float32)
    w2x = w2x.at[0, n0:n0 + n2].set(params["w_h2"][H])          # custom-feature row

    # --- dropout: eval-mode identity.
    # TODO(synk): training-mode stochastic dropout (embeds_dropout_prob) not emulated.

    # Kernel A: encoder + head0 + head2 (rank-1 custom feature), fused.
    seq_flat, tok_logits = fused_token_forward(
        emb.astype(cdt),
        custom_data.reshape(B * S, 1).astype(jnp.float32),
        params["w_enc"].astype(cdt),
        params["b_enc"].reshape(1, H),
        w_tok.astype(cdt), b_tok, w2x)

    sequence_output = seq_flat.reshape(B, S, H)
    out0 = tok_logits[:, :n0].reshape(B, S, n0)                  # per_token head
    out2 = tok_logits[:, n0:n0 + n2].reshape(B, S, n2)           # per_token_additional_features

    # Kernel B: pooler (tanh of first token) + per_sequence head, fused.
    w_h1p = jnp.zeros((H, NPACK), jnp.float32).at[:, :n1].set(params["w_h1"])
    b_h1p = jnp.zeros((1, NPACK), jnp.float32).at[0, :n1].set(params["b_h1"])
    seq_logits = fused_pooler_forward(
        sequence_output[:, 0, :].astype(cdt),
        params["w_pool"].astype(cdt),
        params["b_pool"].reshape(1, H),
        w_h1p.astype(cdt), b_h1p)
    out1 = seq_logits[:, :n1]                                    # per_sequence head

    return [out0, out1, out2]


# ---------------------------------------------------------------------------
# Pure-JAX (f32) reference for correctness checking
# ---------------------------------------------------------------------------
def reference_forward(params, input_ids, custom_data):
    B, S = input_ids.shape
    H = params["word_emb"].shape[1]
    emb = params["word_emb"][input_ids]                               # [B,S,H]
    seq = jax.nn.gelu(emb @ params["w_enc"] + params["b_enc"], approximate=False)
    pooled = jnp.tanh(seq[:, 0, :] @ params["w_pool"] + params["b_pool"])
    out0 = seq @ params["w_h0"] + params["b_h0"]
    out1 = pooled @ params["w_h1"] + params["b_h1"]
    concat = jnp.concatenate([seq, custom_data[..., None]], axis=2)   # [B,S,H+1]
    out2 = concat @ params["w_h2"] + params["b_h2"]
    return [out0, out1, out2]


if __name__ == "__main__":
    B, S, H, VOCAB = 2, 8, 32, 50
    key = jax.random.PRNGKey(0)
    k_param, k_ids, k_cust = jax.random.split(key, 3)

    params = init_params(k_param, vocab=VOCAB, hidden=H)
    input_ids = jax.random.randint(k_ids, (B, S), 0, VOCAB, dtype=jnp.int32)
    custom_data = jax.random.normal(k_cust, (B, S), jnp.float32)

    fwd = jax.jit(adaptive_model_forward)
    logits = fwd(params, input_ids, custom_data)
    logits = jax.block_until_ready(logits)

    assert logits[0].shape == (B, S, 5)
    assert logits[1].shape == (B, 3)
    assert logits[2].shape == (B, S, 4)
    assert all(bool(jnp.all(jnp.isfinite(l))) for l in logits)

    # Numerical check against the f32 JAX reference (bf16 MXU inputs -> loose tol).
    ref = reference_forward(params, input_ids, custom_data)
    for got, want in zip(logits, ref):
        assert bool(jnp.allclose(got, want, atol=2e-3, rtol=2e-2)), (
            float(jnp.max(jnp.abs(got - want))))

    print("KERNEL_OK")
</pallas_src>

<mosaic_0001>
module attributes {stable_mosaic.version = 11 : i64} {
  func.func @_fused_token_kernel(%arg0: i32, %arg1: memref<16x32xbf16, #tpu.memory_space<vmem>>, %arg2: memref<16x1xf32, #tpu.memory_space<vmem>>, %arg3: memref<32x32xbf16, #tpu.memory_space<vmem>>, %arg4: memref<1x32xf32, #tpu.memory_space<vmem>>, %arg5: memref<32x128xbf16, #tpu.memory_space<vmem>>, %arg6: memref<1x128xf32, #tpu.memory_space<vmem>>, %arg7: memref<1x128xf32, #tpu.memory_space<vmem>>, %arg8: memref<16x32xf32, #tpu.memory_space<vmem>>, %arg9: memref<16x128xf32, #tpu.memory_space<vmem>>) attributes {dimension_semantics = [#tpu.dimension_semantics<parallel>], iteration_bounds = array<i64: 1>, scalar_prefetch = 0 : i64, scratch_operands = 0 : i64, tpu.core_type = #tpu.core_type<tc>, window_params = [{transform_indices = @transform_0, window_bounds = array<i64: 16, 32>}, {transform_indices = @transform_1, window_bounds = array<i64: 16, 1>}, {pipeline_mode = #tpu.pipeline_mode<synchronous>, transform_indices = @transform_2, window_bounds = array<i64: 32, 32>}, {pipeline_mode = #tpu.pipeline_mode<synchronous>, transform_indices = @transform_3, window_bounds = array<i64: 1, 32>}, {pipeline_mode = #tpu.pipeline_mode<synchronous>, transform_indices = @transform_4, window_bounds = array<i64: 32, 128>}, {pipeline_mode = #tpu.pipeline_mode<synchronous>, transform_indices = @transform_5, window_bounds = array<i64: 1, 128>}, {pipeline_mode = #tpu.pipeline_mode<synchronous>, transform_indices = @transform_6, window_bounds = array<i64: 1, 128>}, {transform_indices = @transform_7, window_bounds = array<i64: 16, 32>}, {transform_indices = @transform_8, window_bounds = array<i64: 16, 128>}]} {
    %c0 = arith.constant 0 : index
    %c0_0 = arith.constant 0 : index
    %0 = vector.load %arg1[%c0, %c0_0] : memref<16x32xbf16, #tpu.memory_space<vmem>>, vector<16x32xbf16>
    %c0_1 = arith.constant 0 : index
    %c0_2 = arith.constant 0 : index
    %1 = vector.load %arg3[%c0_1, %c0_2] : memref<32x32xbf16, #tpu.memory_space<vmem>>, vector<32x32xbf16>
    %cst = arith.constant dense<0.000000e+00> : vector<16x32xf32>
    %2 = tpu.matmul %0, %1, %cst {dimension_numbers = #tpu.dot_dimension_numbers<[1], [0], [0], [1], [0, 0, 1, 1], [], []>} : vector<16x32xbf16>, vector<32x32xbf16>, vector<16x32xf32> -> vector<16x32xf32>
    %c0_3 = arith.constant 0 : index
    %c0_4 = arith.constant 0 : index
    %3 = vector.load %arg4[%c0_3, %c0_4] : memref<1x32xf32, #tpu.memory_space<vmem>>, vector<1x32xf32>
    %4 = vector.broadcast %3 : vector<1x32xf32> to vector<16x32xf32>
    %5 = arith.addf %2, %4 : vector<16x32xf32>
    %cst_5 = arith.constant 5.000000e-01 : f32
    %6 = vector.broadcast %cst_5 : f32 to vector<16x32xf32>
    %7 = arith.mulf %6, %5 : vector<16x32xf32>
    %cst_6 = arith.constant 0.707106769 : f32
    %8 = vector.broadcast %cst_6 : f32 to vector<16x32xf32>
    %9 = arith.mulf %5, %8 : vector<16x32xf32>
    %cst_7 = arith.constant 0.000000e+00 : f32
    %10 = vector.broadcast %cst_7 : f32 to vector<16x32xf32>
    %11 = arith.cmpf oge, %9, %10 : vector<16x32xf32>
    %cst_8 = arith.constant 1.000000e+00 : f32
    %cst_9 = arith.constant -1.000000e+00 : f32
    %12 = vector.broadcast %cst_8 : f32 to vector<16x32xf32>
    %13 = vector.broadcast %cst_9 : f32 to vector<16x32xf32>
    %14 = arith.select %11, %12, %13 : vector<16x32xi1>, vector<16x32xf32>
    %15 = math.absf %9 : vector<16x32xf32>
    %cst_10 = arith.constant 0.327591091 : f32
    %16 = vector.broadcast %cst_10 : f32 to vector<16x32xf32>
    %17 = arith.mulf %16, %15 : vector<16x32xf32>
    %cst_11 = arith.constant 1.000000e+00 : f32
    %18 = vector.broadcast %cst_11 : f32 to vector<16x32xf32>
    %19 = arith.addf %18, %17 : vector<16x32xf32>
    %cst_12 = arith.constant 1.000000e+00 : f32
    %20 = vector.broadcast %cst_12 : f32 to vector<16x32xf32>
    %21 = arith.divf %20, %19 : vector<16x32xf32>
    %cst_13 = arith.constant 1.06140542 : f32
    %22 = vector.broadcast %cst_13 : f32 to vector<16x32xf32>
    %23 = arith.mulf %22, %21 : vector<16x32xf32>
    %cst_14 = arith.constant -1.45315206 : f32
    %24 = vector.broadcast %cst_14 : f32 to vector<16x32xf32>
    %25 = arith.addf %23, %24 : vector<16x32xf32>
    %26 = arith.mulf %25, %21 : vector<16x32xf32>
    %cst_15 = arith.constant 1.42141378 : f32
    %27 = vector.broadcast %cst_15 : f32 to vector<16x32xf32>
    %28 = arith.addf %26, %27 : vector<16x32xf32>
    %29 = arith.mulf %28, %21 : vector<16x32xf32>
    %cst_16 = arith.constant -0.284496725 : f32
    %30 = vector.broadcast %cst_16 : f32 to vector<16x32xf32>
    %31 = arith.addf %29, %30 : vector<16x32xf32>
    %32 = arith.mulf %31, %21 : vector<16x32xf32>
    %cst_17 = arith.constant 0.254829586 : f32
    %33 = vector.broadcast %cst_17 : f32 to vector<16x32xf32>
    %34 = arith.addf %32, %33 : vector<16x32xf32>
    %35 = arith.mulf %34, %21 : vector<16x32xf32>
    %cst_18 = arith.constant 0.000000e+00 : f32
    %36 = vector.broadcast %cst_18 : f32 to vector<16x32xf32>
    %37 = arith.subf %36, %15 : vector<16x32xf32>
    %38 = arith.mulf %37, %15 : vector<16x32xf32>
    %39 = math.exp %38 : vector<16x32xf32>
    %40 = arith.mulf %35, %39 : vector<16x32xf32>
    %cst_19 = arith.constant 1.000000e+00 : f32
    %41 = vector.broadcast %cst_19 : f32 to vector<16x32xf32>
    %42 = arith.subf %41, %40 : vector<16x32xf32>
    %43 = arith.mulf %14, %42 : vector<16x32xf32>
    %cst_20 = arith.constant 1.000000e+00 : f32
    %44 = vector.broadcast %cst_20 : f32 to vector<16x32xf32>
    %45 = arith.addf %44, %43 : vector<16x32xf32>
    %46 = arith.mulf %7, %45 : vector<16x32xf32>
    %c0_21 = arith.constant 0 : index
    %c0_22 = arith.constant 0 : index
    %47 = vector.load %arg8[%c0_21, %c0_22] : memref<16x32xf32, #tpu.memory_space<vmem>>, vector<16x32xf32>
    tpu.vector_store %arg8[%c0_21, %c0_22], %46 {strides = array<i32>} : memref<16x32xf32, #tpu.memory_space<vmem>>, vector<16x32xf32>,
    %48 = arith.truncf %46 : vector<16x32xf32> to vector<16x32xbf16>
    %c0_23 = arith.constant 0 : index
    %c0_24 = arith.constant 0 : index
    %49 = vector.load %arg5[%c0_23, %c0_24] : memref<32x128xbf16, #tpu.memory_space<vmem>>, vector<32x128xbf16>
    %cst_25 = arith.constant dense<0.000000e+00> : vector<16x128xf32>
    %50 = tpu.matmul %48, %49, %cst_25 {dimension_numbers = #tpu.dot_dimension_numbers<[1], [0], [0], [1], [0, 0, 1, 1], [], []>} : vector<16x32xbf16>, vector<32x128xbf16>, vector<16x128xf32> -> vector<16x128xf32>
    %c0_26 = arith.constant 0 : index
    %c0_27 = arith.constant 0 : index
    %51 = vector.load %arg6[%c0_26, %c0_27] : memref<1x128xf32, #tpu.memory_space<vmem>>, vector<1x128xf32>
    %52 = vector.broadcast %51 : vector<1x128xf32> to vector<16x128xf32>
    %53 = arith.addf %50, %52 : vector<16x128xf32>
    %c0_28 = arith.constant 0 : index
    %c0_29 = arith.constant 0 : index
    %54 = vector.load %arg2[%c0_28, %c0_29] : memref<16x1xf32, #tpu.memory_space<vmem>>, vector<16x1xf32>
    %c0_30 = arith.constant 0 : index
    %c0_31 = arith.constant 0 : index
    %55 = vector.load %arg7[%c0_30, %c0_31] : memref<1x128xf32, #tpu.memory_space<vmem>>, vector<1x128xf32>
    %56 = vector.broadcast %54 : vector<16x1xf32> to vector<16x128xf32>
    %57 = vector.broadcast %55 : vector<1x128xf32> to vector<16x128xf32>
    %58 = arith.mulf %56, %57 : vector<16x128xf32>
    %59 = arith.addf %53, %58 : vector<16x128xf32>
    %c0_32 = arith.constant 0 : index
    %c0_33 = arith.constant 0 : index
    %60 = vector.load %arg9[%c0_32, %c0_33] : memref<16x128xf32, #tpu.memory_space<vmem>>, vector<16x128xf32>
    tpu.vector_store %arg9[%c0_32, %c0_33], %59 {strides = array<i32>} : memref<16x128xf32, #tpu.memory_space<vmem>>, vector<16x128xf32>,
    return
  }
  func.func @transform_0(%arg0: i32) -> (i32, i32) {
    %c0_i32 = arith.constant 0 : i32
    %c0_i32_0 = arith.constant 0 : i32
    return %arg0, %c0_i32 : i32, i32
  }
  func.func @transform_1(%arg0: i32) -> (i32, i32) {
    %c0_i32 = arith.constant 0 : i32
    %c0_i32_0 = arith.constant 0 : i32
    return %arg0, %c0_i32 : i32, i32
  }
  func.func @transform_2(%arg0: i32) -> (i32, i32) {
    %c0_i32 = arith.constant 0 : i32
    %c0_i32_0 = arith.constant 0 : i32
    %c0_i32_1 = arith.constant 0 : i32
    return %c0_i32, %c0_i32_0 : i32, i32
  }
  func.func @transform_3(%arg0: i32) -> (i32, i32) {
    %c0_i32 = arith.constant 0 : i32
    %c0_i32_0 = arith.constant 0 : i32
    %c0_i32_1 = arith.constant 0 : i32
    return %c0_i32, %c0_i32_0 : i32, i32
  }
  func.func @transform_4(%arg0: i32) -> (i32, i32) {
    %c0_i32 = arith.constant 0 : i32
    %c0_i32_0 = arith.constant 0 : i32
    %c0_i32_1 = arith.constant 0 : i32
    return %c0_i32, %c0_i32_0 : i32, i32
  }
  func.func @transform_5(%arg0: i32) -> (i32, i32) {
    %c0_i32 = arith.constant 0 : i32
    %c0_i32_0 = arith.constant 0 : i32
    %c0_i32_1 = arith.constant 0 : i32
    return %c0_i32, %c0_i32_0 : i32, i32
  }
  func.func @transform_6(%arg0: i32) -> (i32, i32) {
    %c0_i32 = arith.constant 0 : i32
    %c0_i32_0 = arith.constant 0 : i32
    %c0_i32_1 = arith.constant 0 : i32
    return %c0_i32, %c0_i32_0 : i32, i32
  }
  func.func @transform_7(%arg0: i32) -> (i32, i32) {
    %c0_i32 = arith.constant 0 : i32
    %c0_i32_0 = arith.constant 0 : i32
    return %arg0, %c0_i32 : i32, i32
  }
  func.func @transform_8(%arg0: i32) -> (i32, i32) {
    %c0_i32 = arith.constant 0 : i32
    %c0_i32_0 = arith.constant 0 : i32
    return %arg0, %c0_i32 : i32, i32
  }
}

module attributes {stable_mosaic.version = 11 : i64} {
  func.func @_fused_pooler_kernel(%arg0: memref<2x32xbf16, #tpu.memory_space<vmem>>, %arg1: memref<32x32xbf16, #tpu.memory_space<vmem>>, %arg2: memref<1x32xf32, #tpu.memory_space<vmem>>, %arg3: memref<32x128xbf16, #tpu.memory_space<vmem>>, %arg4: memref<1x128xf32, #tpu.memory_space<vmem>>, %arg5: memref<2x128xf32, #tpu.memory_space<vmem>>) attributes {dimension_semantics = [], scalar_prefetch = 0 : i64, scratch_operands = 0 : i64, tpu.core_type = #tpu.core_type<tc>} {
    %c0 = arith.constant 0 : index
    %c0_0 = arith.constant 0 : index
    %0 = vector.load %arg0[%c0, %c0_0] : memref<2x32xbf16, #tpu.memory_space<vmem>>, vector<2x32xbf16>
    %c0_1 = arith.constant 0 : index
    %c0_2 = arith.constant 0 : index
    %1 = vector.load %arg1[%c0_1, %c0_2] : memref<32x32xbf16, #tpu.memory_space<vmem>>, vector<32x32xbf16>
    %cst = arith.constant dense<0.000000e+00> : vector<2x32xf32>
    %2 = tpu.matmul %0, %1, %cst {dimension_numbers = #tpu.dot_dimension_numbers<[1], [0], [0], [1], [0, 0, 1, 1], [], []>} : vector<2x32xbf16>, vector<32x32xbf16>, vector<2x32xf32> -> vector<2x32xf32>
    %c0_3 = arith.constant 0 : index
    %c0_4 = arith.constant 0 : index
    %3 = vector.load %arg2[%c0_3, %c0_4] : memref<1x32xf32, #tpu.memory_space<vmem>>, vector<1x32xf32>
    %4 = vector.broadcast %3 : vector<1x32xf32> to vector<2x32xf32>
    %5 = arith.addf %2, %4 : vector<2x32xf32>
    %6 = math.tanh %5 : vector<2x32xf32>
    %7 = arith.truncf %6 : vector<2x32xf32> to vector<2x32xbf16>
    %c0_5 = arith.constant 0 : index
    %c0_6 = arith.constant 0 : index
    %8 = vector.load %arg3[%c0_5, %c0_6] : memref<32x128xbf16, #tpu.memory_space<vmem>>, vector<32x128xbf16>
    %cst_7 = arith.constant dense<0.000000e+00> : vector<2x128xf32>
    %9 = tpu.matmul %7, %8, %cst_7 {dimension_numbers = #tpu.dot_dimension_numbers<[1], [0], [0], [1], [0, 0, 1, 1], [], []>} : vector<2x32xbf16>, vector<32x128xbf16>, vector<2x128xf32> -> vector<2x128xf32>
    %c0_8 = arith.constant 0 : index
    %c0_9 = arith.constant 0 : index
    %10 = vector.load %arg4[%c0_8, %c0_9] : memref<1x128xf32, #tpu.memory_space<vmem>>, vector<1x128xf32>
    %11 = vector.broadcast %10 : vector<1x128xf32> to vector<2x128xf32>
    %12 = arith.addf %9, %11 : vector<2x128xf32>
    %c0_10 = arith.constant 0 : index
    %c0_11 = arith.constant 0 : index
    %13 = vector.load %arg5[%c0_10, %c0_11] : memref<2x128xf32, #tpu.memory_space<vmem>>, vector<2x128xf32>
    tpu.vector_store %arg5[%c0_10, %c0_11], %12 {strides = array<i32>} : memref<2x128xf32, #tpu.memory_space<vmem>>, vector<2x128xf32>,
    return
  }
}

</mosaic_0001>

<llo_original>
// kernel: adaptive_model_forward.2
$region0: #{adaptive_model_forward.2}
  #allocation0 [shape = 'u32[]', space=smem, size = 0x4, offset = 0x4, fixed_abs, tag = 'smem constant byte address 0x4 - core index']
  #allocation1 [shape = 'u32[72,128]{1,0:T(1,128)}', space=vmem, size = 0x9000, scoped, tag = 'internal scratch']
  %s0 = inlined_call_operand.vmem [shape: bf16[16,32], index: 0, kind: input, shape index: {}]
  %s1 = inlined_call_operand.vmem [shape: f32[16,1], index: 1, kind: input, shape index: {}]
  %s2 = inlined_call_operand.vmem [shape: bf16[32,32], index: 2, kind: input, shape index: {}]
  %s3 = inlined_call_operand.vmem [shape: f32[1,32], index: 3, kind: input, shape index: {}]
  %s4 = inlined_call_operand.vmem [shape: bf16[32,128], index: 4, kind: input, shape index: {}]
  %s5 = inlined_call_operand.vmem [shape: f32[1,128], index: 5, kind: input, shape index: {}]
  %s6 = inlined_call_operand.vmem [shape: f32[1,128], index: 6, kind: input, shape index: {}]
  %s7 = inlined_call_operand.vmem [shape: f32[16,32], index: 7, kind: output, shape index: {0}]
  %s8 = inlined_call_operand.vmem [shape: f32[16,128], index: 8, kind: output, shape index: {1}]
  %9 = xla_tuple %s7, %s8
  %s10 = sld [smem:[#allocation0]]
  $region46: #{adaptive_model_forward.2} parent=0
    _
  %s12 = ssub.s32 1, %s10
  %s13 = scalar_select 0, %s12, %s10
  // Predicated region
  $region2: #{adaptive_model_forward.2} parent=0 // pred_check
    _
  $region3: #{adaptive_model_forward.2} parent=0 // pred_check_branch
    %15 = sbr.rel (0) target = $region5
  $region4: #{adaptive_model_forward.2} parent=0 // pred_region
    _
  $region5: #{adaptive_model_forward.2} parent=0 // pred_fallthru
    _
  // Predicated region
  $region6: #{adaptive_model_forward.2} parent=0 // pred_check
    _
  $region7: #{adaptive_model_forward.2} parent=0 // pred_check_branch
    %17 = sbr.rel (0) target = $region9
  $region8: #{adaptive_model_forward.2} parent=0 // pred_region
    _
  $region9: #{adaptive_model_forward.2} parent=0 // pred_fallthru
    _
  // Predicated region
  $region10: #{adaptive_model_forward.2} parent=0 // pred_check
    _
  $region11: #{adaptive_model_forward.2} parent=0 // pred_check_branch
    %19 = sbr.rel (0) target = $region13
  $region12: #{adaptive_model_forward.2} parent=0 // pred_region
    _
  $region13: #{adaptive_model_forward.2} parent=0 // pred_fallthru
    _
  // Predicated region
  $region14: #{adaptive_model_forward.2} parent=0 // pred_check
    _
  $region15: #{adaptive_model_forward.2} parent=0 // pred_check_branch
    %21 = sbr.rel (0) target = $region17
  $region16: #{adaptive_model_forward.2} parent=0 // pred_region
    _
  $region17: #{adaptive_model_forward.2} parent=0 // pred_fallthru
    _
  // Predicated region
  $region18: #{adaptive_model_forward.2} parent=0 // pred_check
    _
  $region19: #{adaptive_model_forward.2} parent=0 // pred_check_branch
    %23 = sbr.rel (0) target = $region21
  $region20: #{adaptive_model_forward.2} parent=0 // pred_region
    _
  $region21: #{adaptive_model_forward.2} parent=0 // pred_fallthru
    _
  // Predicated region
  $region22: #{adaptive_model_forward.2} parent=0 // pred_check
    _
  $region23: #{adaptive_model_forward.2} parent=0 // pred_check_branch
    %25 = sbr.rel (0) target = $region25
  $region24: #{adaptive_model_forward.2} parent=0 // pred_region
    _
  $region25: #{adaptive_model_forward.2} parent=0 // pred_fallthru
    _
  // Predicated region
  $region26: #{adaptive_model_forward.2} parent=0 // pred_check
    _
  $region27: #{adaptive_model_forward.2} parent=0 // pred_check_branch
    %27 = sbr.rel (0) target = $region29
  $region28: #{adaptive_model_forward.2} parent=0 // pred_region
    _
  $region29: #{adaptive_model_forward.2} parent=0 // pred_fallthru
    _
  %v29 = vld [vmem:[%s0] sm:$0xf]
  %v30 = vld [vmem:[%s0 + $0x4] sm:$0xf]
  %v31 = vld [vmem:[%s2] sm:$0xf]
  %v32 = vld [vmem:[%s2 + $0x4] sm:$0xf]
  %v33 = vld [vmem:[%s2 + $0x8] sm:$0xf]
  %v34 = vld [vmem:[%s2 + $0xc] sm:$0xf]
  %v35 = vld [vmem:[%s3] sm:$0x1]
  %v37 = vperm.slane %v35, 0
  %v41 = vunpack.c.l.b16 %v29
  %v42 = vunpack.c.l.b16 %v30
  %v43 = vpack.c.b16 %v42, %v41
  %v48 = vunpack.c.l.b16 %v31
  %v49 = vunpack.c.l.b16 %v32
  %v50 = vunpack.c.l.b16 %v33
  %v51 = vunpack.c.l.b16 %v34
  %v52 = vpack.c.b16 %v49, %v48
  %v53 = vpack.c.b16 %v51, %v50
  %vm56 = vcmask 261120
  %v58 = vsel %vm56, %v43, 0
  %60 = vmatpush.bf16.msra.mxu0 0
  %61 = vmatpush.bf16.msra.mxu0 0
  %62 = vmatpush.bf16.msra.mxu0 0
  %63 = vmatpush.bf16.msra.mxu0 0
  %64 = vmatpush.bf16.msra.mxu0 0
  %65 = vmatpush.bf16.msra.mxu0 0
  %66 = vmatpush.bf16.msra.mxu0 %v53
  %67 = vmatpush.bf16.msra.mxu0 %v52
  %68 = vmatmul.bf16.gmra.mxu0 %v58
  %v69 = vpop.f32.mrf.mxu0
  %v70 = vadd.f32 %v37, %v69
  %v71 = vpop.f32.mrf.mxu0
  %v72 = vadd.f32 %v37, %v71
  %73 = vdwg.mxu0
  %v74 = vmul.f32 %v70, 0.5
  %v75 = vmul.f32 %v72, 0.5
  %v76 = vmul.f32 %v70, 0.70710677
  %v77 = vmul.f32 %v72, 0.70710677
  %vm78 = vcmp.ge.f32.partialorder %v76, 0.0
  %vm79 = vcmp.ge.f32.partialorder %v77, 0.0
  %v80 = vsel %vm78, 1.0, -1.0
  %v81 = vsel %vm79, 1.0, -1.0
  %v82 = vand.u32 2147483647, %v76
  %v83 = vand.u32 2147483647, %v77
  %v84 = vmul.f32 %v82, 0.3275911
  %v85 = vmul.f32 %v83, 0.3275911
  %v86 = vadd.f32 %v84, 1.0
  %v87 = vadd.f32 %v85, 1.0
  %v88 = vrcp.pop %v86
  %v89 = vmul.f32 %v86, %v88
  %v90 = vsub.f32 1.0, %v89
  %v91 = vmul.f32 %v88, %v90
  %v92 = vadd.f32 %v88, %v91
  %vm93 = vweird.f32 %v86
  %vm94 = vweird.f32 %v88
  %vm95 = vmor %vm93, %vm94
  %v96 = vsel %vm95, %v88, %v92
  %v97 = vand.u32 2147483647, %v86
  %vm98 = vcmp.eq.f32.partialorder %v97, 8.507059e+37
  %v99 = vand.u32 %v86, 2147483648
  %v100 = vor.u32 1.1754944e-38, %v99
  %v101 = vsel %vm98, %v100, %v96
  %v102 = vmul.f32 1.0, %v101
  %v103 = vrcp.pop %v87
  %v104 = vmul.f32 %v87, %v103
  %v105 = vsub.f32 1.0, %v104
  %v106 = vmul.f32 %v103, %v105
  %v107 = vadd.f32 %v103, %v106
  %vm108 = vweird.f32 %v87
  %vm109 = vweird.f32 %v103
  %vm110 = vmor %vm108, %vm109
  %v111 = vsel %vm110, %v103, %v107
  %v112 = vand.u32 2147483647, %v87
  %vm113 = vcmp.eq.f32.partialorder %v112, 8.507059e+37
  %v114 = vand.u32 %v87, 2147483648
  %v115 = vor.u32 1.1754944e-38, %v114
  %v116 = vsel %vm113, %v115, %v111
  %v117 = vmul.f32 1.0, %v116
  %v118 = vmul.f32 %v102, 1.0614054
  %v119 = vmul.f32 %v117, 1.0614054
  %v120 = vadd.f32 %v118, -1.4531521
  %v121 = vadd.f32 %v119, -1.4531521
  %v122 = vmul.f32 %v120, %v102
  %v123 = vmul.f32 %v121, %v117
  %v124 = vadd.f32 %v122, 1.4214138
  %v125 = vadd.f32 %v123, 1.4214138
  %v126 = vmul.f32 %v124, %v102
  %v127 = vmul.f32 %v125, %v117
  %v128 = vadd.f32 %v126, -0.28449672
  %v129 = vadd.f32 %v127, -0.28449672
  %v130 = vmul.f32 %v128, %v102
  %v131 = vmul.f32 %v129, %v117
  %v132 = vadd.f32 %v130, 0.2548296
  %v133 = vadd.f32 %v131, 0.2548296
  %v134 = vmul.f32 %v132, %v102
  %v135 = vmul.f32 %v133, %v117
  %v136 = vsub.f32 0.0, %v82
  %v137 = vsub.f32 0.0, %v83
  %v138 = vmul.f32 %v136, %v82
  %v139 = vmul.f32 %v137, %v83
  %v140 = vmul.f32 %v138, 1.442695
  %v141 = vpow.pop %v140
  %v142 = vmul.f32 %v139, 1.442695
  %v143 = vpow.pop %v142
  %v144 = vmul.f32 %v134, %v141
  %v145 = vmul.f32 %v135, %v143
  %v146 = vsub.f32 1.0, %v144
  %v147 = vsub.f32 1.0, %v145
  %v148 = vmul.f32 %v80, %v146
  %v149 = vmul.f32 %v81, %v147
  %v150 = vadd.f32 %v148, 1.0
  %v151 = vadd.f32 %v149, 1.0
  %v152 = vmul.f32 %v74, %v150
  %v153 = vmul.f32 %v75, %v151
  %154 = vst.msk [vmem:[%s7] sm:$0xff] %vm56, %v152
  %155 = vst.msk [vmem:[%s7 + $0x8] sm:$0xff] %vm56, %v153
  %v156 = vpack.c.bf16 %v153, %v152
  %v157 = vld [vmem:[%s4] sm:$0xf]
  %v158 = vld [vmem:[%s4 + $0x4] sm:$0xf]
  %v159 = vld [vmem:[%s4 + $0x8] sm:$0xf]
  %v160 = vld [vmem:[%s4 + $0xc] sm:$0xf]
  %v161 = vld [vmem:[%s5] sm:$0x1]
  %v163 = vperm.slane %v161, 0
  %v169 = vunpack.c.l.b16 %v157
  %v170 = vunpack.c.l.b16 %v158
  %v171 = vunpack.c.l.b16 %v159
  %v172 = vunpack.c.l.b16 %v160
  %v173 = vpack.c.b16 %v170, %v169
  %v174 = vpack.c.b16 %v172, %v171
  %v178 = vsel %vm56, %v156, 0
  %180 = vmatpush.bf16.msra.mxu0 0
  %181 = vmatpush.bf16.msra.mxu0 0
  %182 = vmatpush.bf16.msra.mxu0 0
  %183 = vmatpush.bf16.msra.mxu0 0
  %184 = vmatpush.bf16.msra.mxu0 0
  %185 = vmatpush.bf16.msra.mxu0 0
  %186 = vmatpush.bf16.msra.mxu0 %v174
  %187 = vmatpush.bf16.msra.mxu0 %v173
  %188 = vmatmul.bf16.gmra.mxu0 %v178
  %v189 = vpop.f32.mrf.mxu0
  %v190 = vadd.f32 %v163, %v189
  %v191 = vpop.f32.mrf.mxu0
  %v192 = vadd.f32 %v163, %v191
  %193 = vdwg.mxu0
  %v194 = vld [vmem:[%s1] sm:$0xff]
  %v195 = vld [vmem:[%s1 + $0x8] sm:$0xff]
  %v196 = vld [vmem:[%s6] sm:$0x1]
  %198 = vset.pattern.permute.xlu0 0
  %199 = vperm.xlu0 %198, %v194
  %v200 = vpop.permute.xlu0 %199
  %203 = vset.pattern.permute.xlu0 0
  %204 = vperm.xlu0 %203, %v195
  %v205 = vpop.permute.xlu0 %204
  %v208 = vperm.slane %v196, 0
  %v210 = vmul.f32 %v200, %v208
  %v211 = vmul.f32 %v205, %v208
  %v212 = vadd.f32 %v190, %v210
  %v213 = vadd.f32 %v192, %v211
  %214 = vst [vmem:[%s8] sm:$0xff] %v212
  %215 = vst [vmem:[%s8 + $0x8] sm:$0xff] %v213
  // Predicated region
  $region30: #{adaptive_model_forward.2} parent=0 // pred_check
    _
  $region31: #{adaptive_model_forward.2} parent=0 // pred_check_branch
    %217 = sbr.rel (0) target = $region33
  $region32: #{adaptive_model_forward.2} parent=0 // pred_region
    _
  $region33: #{adaptive_model_forward.2} parent=0 // pred_fallthru
    _
  // Predicated region
  $region34: #{adaptive_model_forward.2} parent=0 // pred_check
    _
  $region35: #{adaptive_model_forward.2} parent=0 // pred_check_branch
    %219 = sbr.rel (0) target = $region37
  $region36: #{adaptive_model_forward.2} parent=0 // pred_region
    _
  $region37: #{adaptive_model_forward.2} parent=0 // pred_fallthru
    _
  // Predicated region
  $region38: #{adaptive_model_forward.2} parent=0 // pred_check
    _
  $region39: #{adaptive_model_forward.2} parent=0 // pred_check_branch
    %221 = sbr.rel (0) target = $region41
  $region40: #{adaptive_model_forward.2} parent=0 // pred_region
    _
  $region41: #{adaptive_model_forward.2} parent=0 // pred_fallthru
    _
  // Predicated region
  $region42: #{adaptive_model_forward.2} parent=0 // pred_check
    _
  $region43: #{adaptive_model_forward.2} parent=0 // pred_check_branch
    %223 = sbr.rel (0) target = $region45
  $region44: #{adaptive_model_forward.2} parent=0 // pred_region
    _
  $region45: #{adaptive_model_forward.2} parent=0 // pred_fallthru
    _

// kernel: adaptive_model_forward.3
$region0: #{adaptive_model_forward.3}
  #allocation0 [shape = 'u32[]', space=smem, size = 0x4, offset = 0x4, fixed_abs, tag = 'smem constant byte address 0x4 - core index']
  #allocation1 [shape = 'u32[72,128]{1,0:T(1,128)}', space=vmem, size = 0x9000, scoped, tag = 'internal scratch']
  %s0 = inlined_call_operand.vmem [shape: bf16[2,32], index: 0, kind: input, shape index: {}]
  %s1 = inlined_call_operand.vmem [shape: bf16[32,32], index: 1, kind: input, shape index: {}]
  %s2 = inlined_call_operand.vmem [shape: f32[1,32], index: 2, kind: input, shape index: {}]
  %s3 = inlined_call_operand.vmem [shape: bf16[32,128], index: 3, kind: input, shape index: {}]
  %s4 = inlined_call_operand.vmem [shape: f32[1,128], index: 4, kind: input, shape index: {}]
  %s5 = inlined_call_operand.hbm [shape: f32[2,128], index: 5, kind: output, shape index: {}]
  %s6 = sld [smem:[#allocation0]]
  $region30: #{adaptive_model_forward.3} parent=0
    _
  %s8 = ssub.s32 1, %s6
  %s9 = scalar_select 0, %s8, %s6
  $region1: #{adaptive_model_forward.3} parent=0
    #allocation2 [shape = 'u8[1024]{0}', space=vmem, size = 0x400, scoped, tag = 'output window, operand 0, single buffered']
    #allocation3 [shape = 's32[1]{0}', space=sflag, size = 0x4, scoped, tag = 'scoped memory for adaptive_model_forward.3']
    %10 = vsyncpa [#allocation3], 0
    // Predicated region
    $region2: #{adaptive_model_forward.3} parent=1 // pred_check
      _
    $region3: #{adaptive_model_forward.3} parent=1 // pred_check_branch
      %12 = sbr.rel (0) target = $region5
    $region4: #{adaptive_model_forward.3} parent=1 // pred_region
      _
    $region5: #{adaptive_model_forward.3} parent=1 // pred_fallthru
      _
    // Predicated region
    $region6: #{adaptive_model_forward.3} parent=1 // pred_check
      _
    $region7: #{adaptive_model_forward.3} parent=1 // pred_check_branch
      %14 = sbr.rel (0) target = $region9
    $region8: #{adaptive_model_forward.3} parent=1 // pred_region
      _
    $region9: #{adaptive_model_forward.3} parent=1 // pred_fallthru
      _
    // Predicated region
    $region10: #{adaptive_model_forward.3} parent=1 // pred_check
      _
    $region11: #{adaptive_model_forward.3} parent=1 // pred_check_branch
      %16 = sbr.rel (0) target = $region13
    $region12: #{adaptive_model_forward.3} parent=1 // pred_region
      _
    $region13: #{adaptive_model_forward.3} parent=1 // pred_fallthru
      _
    // Predicated region
    $region14: #{adaptive_model_forward.3} parent=1 // pred_check
      _
    $region15: #{adaptive_model_forward.3} parent=1 // pred_check_branch
      %18 = sbr.rel (0) target = $region17
    $region16: #{adaptive_model_forward.3} parent=1 // pred_region
      _
    $region17: #{adaptive_model_forward.3} parent=1 // pred_fallthru
      _
    // Predicated region
    $region18: #{adaptive_model_forward.3} parent=1 // pred_check
      _
    $region19: #{adaptive_model_forward.3} parent=1 // pred_check_branch
      %20 = sbr.rel (0) target = $region21
    $region20: #{adaptive_model_forward.3} parent=1 // pred_region
      _
    $region21: #{adaptive_model_forward.3} parent=1 // pred_fallthru
      _
    %v22 = vld [vmem:[%s0] sm:$0x1]
    %v23 = vld [vmem:[%s1] sm:$0xf]
    %v24 = vld [vmem:[%s1 + $0x4] sm:$0xf]
    %v25 = vld [vmem:[%s1 + $0x8] sm:$0xf]
    %v26 = vld [vmem:[%s1 + $0xc] sm:$0xf]
    %v27 = vld [vmem:[%s2] sm:$0x1]
    %v29 = vperm.slane %v27, 0
    %v35 = vunpack.c.l.b16 %v23
    %v36 = vunpack.c.l.b16 %v24
    %v37 = vunpack.c.l.b16 %v25
    %v38 = vunpack.c.l.b16 %v26
    %v39 = vpack.c.b16 %v36, %v35
    %v40 = vpack.c.b16 %v38, %v37
    %vm43 = vcmask 261120
    %v45 = vsel %vm43, %v22, 0
    %47 = vmatpush.bf16.msra.mxu0 0
    %48 = vmatpush.bf16.msra.mxu0 0
    %49 = vmatpush.bf16.msra.mxu0 0
    %50 = vmatpush.bf16.msra.mxu0 0
    %51 = vmatpush.bf16.msra.mxu0 0
    %52 = vmatpush.bf16.msra.mxu0 0
    %53 = vmatpush.bf16.msra.mxu0 %v40
    %54 = vmatpush.bf16.msra.mxu0 %v39
    %55 = vmatmul.bf16.gmra.mxu0 %v45
    %v56 = vpop.f32.mrf.mxu0
    %v57 = vadd.f32 %v29, %v56
    %v58 = vpop.f32.mrf.mxu0
    %59 = vdwg.mxu0
    %v60 = vtanh.pop %v57
    %v61 = vpack.c.bf16 %v60, %v60
    %v62 = vld [vmem:[%s3] sm:$0xf]
    %v63 = vld [vmem:[%s3 + $0x4] sm:$0xf]
    %v64 = vld [vmem:[%s3 + $0x8] sm:$0xf]
    %v65 = vld [vmem:[%s3 + $0xc] sm:$0xf]
    %v66 = vld [vmem:[%s4] sm:$0x1]
    %v68 = vperm.slane %v66, 0
    %v74 = vunpack.c.l.b16 %v62
    %v75 = vunpack.c.l.b16 %v63
    %v76 = vunpack.c.l.b16 %v64
    %v77 = vunpack.c.l.b16 %v65
    %v78 = vpack.c.b16 %v75, %v74
    %v79 = vpack.c.b16 %v77, %v76
    %v83 = vsel %vm43, %v61, 0
    %85 = vmatpush.bf16.msra.mxu0 0
    %86 = vmatpush.bf16.msra.mxu0 0
    %87 = vmatpush.bf16.msra.mxu0 0
    %88 = vmatpush.bf16.msra.mxu0 0
    %89 = vmatpush.bf16.msra.mxu0 0
    %90 = vmatpush.bf16.msra.mxu0 0
    %91 = vmatpush.bf16.msra.mxu0 %v79
    %92 = vmatpush.bf16.msra.mxu0 %v78
    %93 = vmatmul.bf16.gmra.mxu0 %v83
    %v94 = vpop.f32.mrf.mxu0
    %v95 = vadd.f32 %v68, %v94
    %v96 = vpop.f32.mrf.mxu0
    %97 = vdwg.mxu0
    %98 = vst [vmem:[#allocation2] sm:$0x3] %v95
    // Predicated region
    $region22: #{adaptive_model_forward.3} parent=1 // pred_check
      _
    $region23: #{adaptive_model_forward.3} parent=1 // pred_check_branch
      %100 = sbr.rel (0) target = $region25
    $region24: #{adaptive_model_forward.3} parent=1 // pred_region
      %102 = vsyncadd [#allocation3], 0
      %s104 = sshll.u32 [#allocation2], 4
      %s105 = int_to_ptr.vmem [resolvable:$true] %s104
      %s106 = sshll.u32 %s5, 4
      %s107 = int_to_ptr.hbm [resolvable:$true] %s106
      %109 = dma.vmem_to_hbm [thread:$0]  %s105, 32, %s107, [#allocation3]
    $region25: #{adaptive_model_forward.3} parent=1 // pred_fallthru
      _
    // Predicated region
    $region26: #{adaptive_model_forward.3} parent=1 // pred_check
      _
    $region27: #{adaptive_model_forward.3} parent=1 // pred_check_branch
      %111 = sbr.rel (0) target = $region29
    $region28: #{adaptive_model_forward.3} parent=1 // pred_region
      %113 = dma.done [#allocation3], 32
    $region29: #{adaptive_model_forward.3} parent=1 // pred_fallthru
      _
    %114 = vsyncpa [#allocation3], 1

</llo_original>
